<compile_context>
chip_gen: v5e
topology: v5e:2x2
jax: 0.10.0
libtpu: 0.0.40
codegen_flags: <defaults>
</compile_context>

<pallas_src>
import jax
import jax.numpy as jnp
from jax.experimental import pallas as pl
from jax.experimental.pallas import tpu as pltpu

IN_DIM = 768
HID_DIM = 512


def _round_up(x, m):
    return ((x + m - 1) // m) * m


def _choose_tile_m(batch):
    """Pick the batch tile. Big tiles amortize the ~0.35us per-grid-step cost;
    mid-size batches are split into >=2 tiles so megacore (v7x) gets both TCs."""
    try:
        kind = jax.devices()[0].device_kind.lower()
    except Exception:
        kind = ""
    if "v5" in kind:
        tm_max, align = 1024, 128     # 4x128^2 MXU, 1 TensorCore
    else:
        tm_max, align = 2048, 256     # 2x256^2 MXU (v6e/v7x)
    tm_small = _round_up(max(batch, 1), 16)   # bf16 packs 16 rows / vreg
    if tm_small <= align:
        return min(tm_small, tm_max)          # single small tile
    # split roughly in half (>=2 grid steps), keep MXU-friendly alignment
    tm = _round_up(max(align, _round_up(batch, align) // 2), align)
    return min(tm, tm_max)


def critic_kernel(x_ref, w1_ref, b1_ref, w2_ref, o_ref):
    # x: (TM, 768) f32 (or bf16) block; w1: (768, 512) bf16 (VMEM-resident);
    # b1/w2: (1, 512) f32 (VMEM-resident); o: (1, TM) f32 lane-dense block.
    x = x_ref[...].astype(jnp.bfloat16)                               # in-kernel cast (VPU)
    h = jnp.dot(x, w1_ref[...], preferred_element_type=jnp.float32)  # MXU, f32 accumulation
    h = jnp.maximum(h + b1_ref[...], 0.0)                            # bias + ReLU (VPU)
    # Dropout is identity at inference time (module uses nn.Dropout).
    # TODO(synk): add pltpu.prng_random_bits-based mask (+ 1/(1-p) scale) for training mode.
    # N=1 second layer as VPU multiply + lane reduction (keeps the MXU slot free).
    v = jnp.sum(h * w2_ref[...], axis=-1)                            # (TM,)
    # Lane-dense store: batch rows mapped onto the lane axis (full-lane vst).
    o_ref[...] = v[None, :]                                          # (1, TM)


def critic_forward(state, w1_bf16, b1, w2_row, b2):
    """state: (B, 768) f32 (or bf16) -> value: (B,) f32 (trailing dim squeezed)."""
    B = state.shape[0]
    tm = _choose_tile_m(B)
    num_tiles = pl.cdiv(B, tm)

    rows = num_tiles * tm
    flops = 2 * rows * IN_DIM * HID_DIM + 3 * rows * HID_DIM
    bytes_accessed = (B * IN_DIM * state.dtype.itemsize
                      + IN_DIM * HID_DIM * 2 + 2 * HID_DIM * 4 + rows * 4)

    out = pl.pallas_call(
        critic_kernel,
        out_shape=jax.ShapeDtypeStruct((num_tiles, tm), jnp.float32),
        grid=(num_tiles,),
        in_specs=[
            # batch-tiled activations; tail block is partial (rows are clipped
            # on the output side — per-row compute only, no cross-row reductions)
            pl.BlockSpec((tm, IN_DIM), lambda i: (i, 0)),
            # constant-index weights: Pallas skips re-DMA when the block index
            # doesn't change, so these stay VMEM-resident across grid steps.
            pl.BlockSpec((IN_DIM, HID_DIM), lambda i: (0, 0)),
            pl.BlockSpec((1, HID_DIM), lambda i: (0, 0)),
            pl.BlockSpec((1, HID_DIM), lambda i: (0, 0)),
        ],
        out_specs=pl.BlockSpec((1, tm), lambda i: (i, 0)),
        compiler_params=pltpu.CompilerParams(
            dimension_semantics=("parallel",)),
        cost_estimate=pl.CostEstimate(
            flops=flops, transcendentals=0, bytes_accessed=bytes_accessed),
    )(state, w1_bf16, b1, w2_row)

    # Trailing-singleton squeeze as in the PyTorch module; b2 scalar bias added
    # here (avoids a pointless (1,1) VMEM tile / extra DMA).
    value = out.reshape(-1)[:B] + b2
    if B == 1:                       # torch .squeeze() also drops a size-1 batch dim
        value = value[0]
    return value


def init_params(key):
    # Deterministic synthetic init mimicking nn.Linear's U(-1/sqrt(fan_in), 1/sqrt(fan_in)).
    # w1 is stored in bf16 once, at parameter-load time (no per-call convert).
    k1, k2, k3, k4 = jax.random.split(key, 4)
    lim1 = 1.0 / jnp.sqrt(jnp.float32(IN_DIM))
    lim2 = 1.0 / jnp.sqrt(jnp.float32(HID_DIM))
    w1 = jax.random.uniform(k1, (IN_DIM, HID_DIM), jnp.float32, -lim1, lim1)
    b1 = jax.random.uniform(k2, (1, HID_DIM), jnp.float32, -lim1, lim1)
    w2_row = jax.random.uniform(k3, (1, HID_DIM), jnp.float32, -lim2, lim2)
    b2 = jax.random.uniform(k4, (1,), jnp.float32, -lim2, lim2)
    return w1.astype(jnp.bfloat16), b1, w2_row, b2


def reference_forward(state, w1_bf16, b1, w2_row, b2):
    # Pure-JAX reference (f32 math on the same bf16-rounded w1).
    h = jnp.maximum(state @ w1_bf16.astype(jnp.float32) + b1, 0.0)
    return jnp.sum(h * w2_row, axis=-1) + b2


if __name__ == "__main__":
    key = jax.random.PRNGKey(0)
    kp, kx1, kx2 = jax.random.split(key, 3)
    w1_bf, b1, w2_row, b2 = init_params(kp)

    fwd = jax.jit(critic_forward)

    # Small batch (the actual NavGPT use case): single tile, partial block.
    B1 = 8
    s1 = jax.random.normal(kx1, (B1, IN_DIM), jnp.float32)
    out1 = jax.block_until_ready(fwd(s1, w1_bf, b1, w2_row, b2))
    ref1 = reference_forward(s1, w1_bf, b1, w2_row, b2)
    assert out1.shape == (B1,), out1.shape
    # bf16 activations/weights with f32 accumulation: expect ~1e-2 abs error.
    assert jnp.allclose(out1, ref1, atol=3e-2, rtol=2e-2), "mismatch vs JAX reference (B=8)"

    # Larger batch: exercises multi-tile grid + clipped partial tail block.
    B2 = 300
    s2 = jax.random.normal(kx2, (B2, IN_DIM), jnp.float32)
    out2 = jax.block_until_ready(fwd(s2, w1_bf, b1, w2_row, b2))
    ref2 = reference_forward(s2, w1_bf, b1, w2_row, b2)
    assert out2.shape == (B2,), out2.shape
    assert jnp.allclose(out2, ref2, atol=3e-2, rtol=2e-2), "mismatch vs JAX reference (B=300)"

    print("KERNEL_OK")
</pallas_src>

<mosaic_0001>
module attributes {stable_mosaic.version = 11 : i64} {
  func.func @critic_kernel(%arg0: i32, %arg1: memref<16x768xf32, #tpu.memory_space<vmem>>, %arg2: memref<768x512xbf16, #tpu.memory_space<vmem>>, %arg3: memref<1x512xf32, #tpu.memory_space<vmem>>, %arg4: memref<1x512xf32, #tpu.memory_space<vmem>>, %arg5: memref<1x16xf32, #tpu.memory_space<vmem>>) attributes {dimension_semantics = [#tpu.dimension_semantics<parallel>], iteration_bounds = array<i64: 1>, scalar_prefetch = 0 : i64, scratch_operands = 0 : i64, tpu.core_type = #tpu.core_type<tc>, window_params = [{transform_indices = @transform_0, window_bounds = array<i64: 16, 768>}, {pipeline_mode = #tpu.pipeline_mode<synchronous>, transform_indices = @transform_1, window_bounds = array<i64: 768, 512>}, {pipeline_mode = #tpu.pipeline_mode<synchronous>, transform_indices = @transform_2, window_bounds = array<i64: 1, 512>}, {pipeline_mode = #tpu.pipeline_mode<synchronous>, transform_indices = @transform_3, window_bounds = array<i64: 1, 512>}, {transform_indices = @transform_4, window_bounds = array<i64: 1, 16>}]} {
    %c0 = arith.constant 0 : index
    %c0_0 = arith.constant 0 : index
    %0 = vector.load %arg1[%c0, %c0_0] : memref<16x768xf32, #tpu.memory_space<vmem>>, vector<16x768xf32>
    %1 = arith.truncf %0 : vector<16x768xf32> to vector<16x768xbf16>
    %c0_1 = arith.constant 0 : index
    %c0_2 = arith.constant 0 : index
    %2 = vector.load %arg2[%c0_1, %c0_2] : memref<768x512xbf16, #tpu.memory_space<vmem>>, vector<768x512xbf16>
    %cst = arith.constant dense<0.000000e+00> : vector<16x512xf32>
    %3 = tpu.matmul %1, %2, %cst {dimension_numbers = #tpu.dot_dimension_numbers<[1], [0], [0], [1], [0, 0, 1, 1], [], []>} : vector<16x768xbf16>, vector<768x512xbf16>, vector<16x512xf32> -> vector<16x512xf32>
    %c0_3 = arith.constant 0 : index
    %c0_4 = arith.constant 0 : index
    %4 = vector.load %arg3[%c0_3, %c0_4] : memref<1x512xf32, #tpu.memory_space<vmem>>, vector<1x512xf32>
    %5 = vector.broadcast %4 : vector<1x512xf32> to vector<16x512xf32>
    %6 = arith.addf %3, %5 : vector<16x512xf32>
    %cst_5 = arith.constant 0.000000e+00 : f32
    %7 = vector.broadcast %cst_5 : f32 to vector<16x512xf32>
    %8 = arith.maximumf %6, %7 : vector<16x512xf32>
    %c0_6 = arith.constant 0 : index
    %c0_7 = arith.constant 0 : index
    %9 = vector.load %arg4[%c0_6, %c0_7] : memref<1x512xf32, #tpu.memory_space<vmem>>, vector<1x512xf32>
    %10 = vector.broadcast %9 : vector<1x512xf32> to vector<16x512xf32>
    %11 = arith.mulf %8, %10 : vector<16x512xf32>
    %cst_8 = arith.constant dense<0.000000e+00> : vector<16xf32>
    %12 = vector.multi_reduction <add>, %11, %cst_8 [1] : vector<16x512xf32> to vector<16xf32>
    %13 = vector.shape_cast %12 : vector<16xf32> to vector<1x16xf32>
    %c0_9 = arith.constant 0 : index
    %c0_10 = arith.constant 0 : index
    %14 = vector.load %arg5[%c0_9, %c0_10] : memref<1x16xf32, #tpu.memory_space<vmem>>, vector<1x16xf32>
    tpu.vector_store %arg5[%c0_9, %c0_10], %13 {strides = array<i32>} : memref<1x16xf32, #tpu.memory_space<vmem>>, vector<1x16xf32>,
    return
  }
  func.func @transform_0(%arg0: i32) -> (i32, i32) {
    %c0_i32 = arith.constant 0 : i32
    %c0_i32_0 = arith.constant 0 : i32
    return %arg0, %c0_i32 : i32, i32
  }
  func.func @transform_1(%arg0: i32) -> (i32, i32) {
    %c0_i32 = arith.constant 0 : i32
    %c0_i32_0 = arith.constant 0 : i32
    %c0_i32_1 = arith.constant 0 : i32
    return %c0_i32, %c0_i32_0 : i32, i32
  }
  func.func @transform_2(%arg0: i32) -> (i32, i32) {
    %c0_i32 = arith.constant 0 : i32
    %c0_i32_0 = arith.constant 0 : i32
    %c0_i32_1 = arith.constant 0 : i32
    return %c0_i32, %c0_i32_0 : i32, i32
  }
  func.func @transform_3(%arg0: i32) -> (i32, i32) {
    %c0_i32 = arith.constant 0 : i32
    %c0_i32_0 = arith.constant 0 : i32
    %c0_i32_1 = arith.constant 0 : i32
    return %c0_i32, %c0_i32_0 : i32, i32
  }
  func.func @transform_4(%arg0: i32) -> (i32, i32) {
    %c0_i32 = arith.constant 0 : i32
    %c0_i32_0 = arith.constant 0 : i32
    return %arg0, %c0_i32 : i32, i32
  }
}

</mosaic_0001>

<llo_original>
// kernel: critic_forward.1
$region0: #{critic_forward.1}
  #allocation0 [shape = 'u32[]', space=smem, size = 0x4, offset = 0x4, fixed_abs, tag = 'smem constant byte address 0x4 - core index']
  #allocation1 [shape = 'u32[72,128]{1,0:T(1,128)}', space=vmem, size = 0x9000, scoped, tag = 'internal scratch']
  %s0 = inlined_call_operand.hbm [shape: f32[8,768], index: 0, kind: input, shape index: {}]
  %s1 = inlined_call_operand.hbm [shape: bf16[768,512], index: 1, kind: input, shape index: {}]
  %s2 = inlined_call_operand.vmem [shape: f32[1,512], index: 2, kind: input, shape index: {}]
  %s3 = inlined_call_operand.hbm [shape: f32[1,512], index: 3, kind: input, shape index: {}]
  %s4 = inlined_call_operand.vmem [shape: f32[1,16], index: 4, kind: output, shape index: {}]
  %s5 = sld [smem:[#allocation0]]
  $region38: #{critic_forward.1} parent=0
    _
  %s7 = ssub.s32 1, %s5
  %s8 = scalar_select 0, %s7, %s5
  $region1: #{critic_forward.1} parent=0
    #allocation2 [shape = 'u8[49152]{0}', space=vmem, size = 0xc000, scoped, tag = 'input window, operand 0, single buffered']
    #allocation3 [shape = 's32[1]{0}', space=sflag, size = 0x4, scoped, tag = 'scoped memory for critic_forward.1']
    #allocation4 [shape = 'u8[786432]{0}', space=vmem, size = 0xc0000, scoped, tag = 'input window, operand 1, single buffered']
    #allocation5 [shape = 's32[1]{0}', space=sflag, size = 0x4, scoped, tag = 'scoped memory for critic_forward.1']
    #allocation6 [shape = 'u8[2048]{0}', space=vmem, size = 0x800, scoped, tag = 'input window, operand 3, single buffered']
    %9 = vsyncpa [#allocation3], 0
    %10 = vsyncpa [#allocation5], 0
    // Predicated region
    $region2: #{critic_forward.1} parent=1 // pred_check
      _
    $region3: #{critic_forward.1} parent=1 // pred_check_branch
      %12 = sbr.rel (0) target = $region5
    $region4: #{critic_forward.1} parent=1 // pred_region
      %14 = vsyncadd [#allocation3], 768
      %s15 = sshll.u32 %s0, 4
      %s16 = int_to_ptr.hbm [resolvable:$true] %s15
      %s17 = sshll.u32 [#allocation2], 4
      %s18 = int_to_ptr.vmem [resolvable:$true] %s17
      %23 = dma.hbm_to_vmem [thread:$0]  %s16, 768, %s18, [#allocation3], 768, 768, 48
    $region5: #{critic_forward.1} parent=1 // pred_fallthru
      _
    // Predicated region
    $region6: #{critic_forward.1} parent=1 // pred_check
      _
    $region7: #{critic_forward.1} parent=1 // pred_check_branch
      %25 = sbr.rel (0) target = $region9
    $region8: #{critic_forward.1} parent=1 // pred_region
      %27 = vsyncadd [#allocation5], 0
      %s28 = sshll.u32 %s1, 4
      %s29 = int_to_ptr.hbm [resolvable:$true] %s28
      %s30 = sshll.u32 [#allocation4], 4
      %s31 = int_to_ptr.vmem [resolvable:$true] %s30
      %36 = dma.hbm_to_vmem [thread:$0]  %s29, 24576, %s31, [#allocation5], 256, 256, 16
    $region9: #{critic_forward.1} parent=1 // pred_fallthru
      _
    // Predicated region
    $region10: #{critic_forward.1} parent=1 // pred_check
      _
    $region11: #{critic_forward.1} parent=1 // pred_check_branch
      %38 = sbr.rel (0) target = $region13
    $region12: #{critic_forward.1} parent=1 // pred_region
      _
    $region13: #{critic_forward.1} parent=1 // pred_fallthru
      _
    // Predicated region
    $region14: #{critic_forward.1} parent=1 // pred_check
      _
    $region15: #{critic_forward.1} parent=1 // pred_check_branch
      %40 = sbr.rel (0) target = $region17
    $region16: #{critic_forward.1} parent=1 // pred_region
      %42 = vsyncadd [#allocation5], 0
      %s44 = sshll.u32 %s3, 4
      %s45 = int_to_ptr.hbm [resolvable:$true] %s44
      %s46 = sshll.u32 [#allocation6], 4
      %s47 = int_to_ptr.vmem [resolvable:$true] %s46
      %49 = dma.hbm_to_vmem [thread:$0]  %s45, 64, %s47, [#allocation5]
    $region17: #{critic_forward.1} parent=1 // pred_fallthru
      _
    // Predicated region
    $region18: #{critic_forward.1} parent=1 // pred_check
      _
    $region19: #{critic_forward.1} parent=1 // pred_check_branch
      %51 = sbr.rel (0) target = $region21
    $region20: #{critic_forward.1} parent=1 // pred_region
      %53 = dma.done [#allocation3], 1536
    $region21: #{critic_forward.1} parent=1 // pred_fallthru
      _
    // Predicated region
    $region22: #{critic_forward.1} parent=1 // pred_check
      _
    $region23: #{critic_forward.1} parent=1 // pred_check_branch
      %55 = sbr.rel (0) target = $region25
    $region24: #{critic_forward.1} parent=1 // pred_region
      %57 = dma.done [#allocation5], 24576
    $region25: #{critic_forward.1} parent=1 // pred_fallthru
      _
    // Predicated region
    $region26: #{critic_forward.1} parent=1 // pred_check
      _
    $region27: #{critic_forward.1} parent=1 // pred_check_branch
      %59 = sbr.rel (0) target = $region29
    $region28: #{critic_forward.1} parent=1 // pred_region
      %61 = dma.done [#allocation5], 64
    $region29: #{critic_forward.1} parent=1 // pred_fallthru
      _
    %v62 = vld [vmem:[#allocation2] sm:$0xff]
    %v63 = vld [vmem:[#allocation2 + $0x8] sm:$0xff]
    %v64 = vld [vmem:[#allocation2 + $0x10] sm:$0xff]
    %v65 = vld [vmem:[#allocation2 + $0x18] sm:$0xff]
    %v66 = vld [vmem:[#allocation2 + $0x20] sm:$0xff]
    %v67 = vld [vmem:[#allocation2 + $0x28] sm:$0xff]
    %v68 = vld [vmem:[#allocation2 + $0x30] sm:$0xff]
    %v69 = vld [vmem:[#allocation2 + $0x38] sm:$0xff]
    %v70 = vld [vmem:[#allocation2 + $0x40] sm:$0xff]
    %v71 = vld [vmem:[#allocation2 + $0x48] sm:$0xff]
    %v72 = vld [vmem:[#allocation2 + $0x50] sm:$0xff]
    %v73 = vld [vmem:[#allocation2 + $0x58] sm:$0xff]
    %v74 = vpack.c.bf16 %v68, %v62
    %v75 = vpack.c.bf16 %v69, %v63
    %v76 = vpack.c.bf16 %v70, %v64
    %v77 = vpack.c.bf16 %v71, %v65
    %v78 = vpack.c.bf16 %v72, %v66
    %v79 = vpack.c.bf16 %v73, %v67
    %v80 = vld [vmem:[#allocation4] sm:$0xff]
    %v81 = vld [vmem:[#allocation4 + $0x8] sm:$0xff]
    %v82 = vld [vmem:[#allocation4 + $0x10] sm:$0xff]
    %v83 = vld [vmem:[#allocation4 + $0x18] sm:$0xff]
    %v84 = vld [vmem:[#allocation4 + $0x20] sm:$0xff]
    %v85 = vld [vmem:[#allocation4 + $0x28] sm:$0xff]
    %v86 = vld [vmem:[#allocation4 + $0x30] sm:$0xff]
    %v87 = vld [vmem:[#allocation4 + $0x38] sm:$0xff]
    %v88 = vld [vmem:[#allocation4 + $0x40] sm:$0xff]
    %v89 = vld [vmem:[#allocation4 + $0x48] sm:$0xff]
    %v90 = vld [vmem:[#allocation4 + $0x50] sm:$0xff]
    %v91 = vld [vmem:[#allocation4 + $0x58] sm:$0xff]
    %v92 = vld [vmem:[#allocation4 + $0x60] sm:$0xff]
    %v93 = vld [vmem:[#allocation4 + $0x68] sm:$0xff]
    %v94 = vld [vmem:[#allocation4 + $0x70] sm:$0xff]
    %v95 = vld [vmem:[#allocation4 + $0x78] sm:$0xff]
    %v96 = vld [vmem:[#allocation4 + $0x80] sm:$0xff]
    %v97 = vld [vmem:[#allocation4 + $0x88] sm:$0xff]
    %v98 = vld [vmem:[#allocation4 + $0x90] sm:$0xff]
    %v99 = vld [vmem:[#allocation4 + $0x98] sm:$0xff]
    %v100 = vld [vmem:[#allocation4 + $0xa0] sm:$0xff]
    %v101 = vld [vmem:[#allocation4 + $0xa8] sm:$0xff]
    %v102 = vld [vmem:[#allocation4 + $0xb0] sm:$0xff]
    %v103 = vld [vmem:[#allocation4 + $0xb8] sm:$0xff]
    %v104 = vld [vmem:[#allocation4 + $0xc0] sm:$0xff]
    %v105 = vld [vmem:[#allocation4 + $0xc8] sm:$0xff]
    %v106 = vld [vmem:[#allocation4 + $0xd0] sm:$0xff]
    %v107 = vld [vmem:[#allocation4 + $0xd8] sm:$0xff]
    %v108 = vld [vmem:[#allocation4 + $0xe0] sm:$0xff]
    %v109 = vld [vmem:[#allocation4 + $0xe8] sm:$0xff]
    %v110 = vld [vmem:[#allocation4 + $0xf0] sm:$0xff]
    %v111 = vld [vmem:[#allocation4 + $0xf8] sm:$0xff]
    %v112 = vld [vmem:[#allocation4 + $0x100] sm:$0xff]
    %v113 = vld [vmem:[#allocation4 + $0x108] sm:$0xff]
    %v114 = vld [vmem:[#allocation4 + $0x110] sm:$0xff]
    %v115 = vld [vmem:[#allocation4 + $0x118] sm:$0xff]
    %v116 = vld [vmem:[#allocation4 + $0x120] sm:$0xff]
    %v117 = vld [vmem:[#allocation4 + $0x128] sm:$0xff]
    %v118 = vld [vmem:[#allocation4 + $0x130] sm:$0xff]
    %v119 = vld [vmem:[#allocation4 + $0x138] sm:$0xff]
    %v120 = vld [vmem:[#allocation4 + $0x140] sm:$0xff]
    %v121 = vld [vmem:[#allocation4 + $0x148] sm:$0xff]
    %v122 = vld [vmem:[#allocation4 + $0x150] sm:$0xff]
    %v123 = vld [vmem:[#allocation4 + $0x158] sm:$0xff]
    %v124 = vld [vmem:[#allocation4 + $0x160] sm:$0xff]
    %v125 = vld [vmem:[#allocation4 + $0x168] sm:$0xff]
    %v126 = vld [vmem:[#allocation4 + $0x170] sm:$0xff]
    %v127 = vld [vmem:[#allocation4 + $0x178] sm:$0xff]
    %v128 = vld [vmem:[#allocation4 + $0x180] sm:$0xff]
    %v129 = vld [vmem:[#allocation4 + $0x188] sm:$0xff]
    %v130 = vld [vmem:[#allocation4 + $0x190] sm:$0xff]
    %v131 = vld [vmem:[#allocation4 + $0x198] sm:$0xff]
    %v132 = vld [vmem:[#allocation4 + $0x1a0] sm:$0xff]
    %v133 = vld [vmem:[#allocation4 + $0x1a8] sm:$0xff]
    %v134 = vld [vmem:[#allocation4 + $0x1b0] sm:$0xff]
    %v135 = vld [vmem:[#allocation4 + $0x1b8] sm:$0xff]
    %v136 = vld [vmem:[#allocation4 + $0x1c0] sm:$0xff]
    %v137 = vld [vmem:[#allocation4 + $0x1c8] sm:$0xff]
    %v138 = vld [vmem:[#allocation4 + $0x1d0] sm:$0xff]
    %v139 = vld [vmem:[#allocation4 + $0x1d8] sm:$0xff]
    %v140 = vld [vmem:[#allocation4 + $0x1e0] sm:$0xff]
    %v141 = vld [vmem:[#allocation4 + $0x1e8] sm:$0xff]
    %v142 = vld [vmem:[#allocation4 + $0x1f0] sm:$0xff]
    %v143 = vld [vmem:[#allocation4 + $0x1f8] sm:$0xff]
    %v144 = vld [vmem:[#allocation4 + $0x200] sm:$0xff]
    %v145 = vld [vmem:[#allocation4 + $0x208] sm:$0xff]
    %v146 = vld [vmem:[#allocation4 + $0x210] sm:$0xff]
    %v147 = vld [vmem:[#allocation4 + $0x218] sm:$0xff]
    %v148 = vld [vmem:[#allocation4 + $0x220] sm:$0xff]
    %v149 = vld [vmem:[#allocation4 + $0x228] sm:$0xff]
    %v150 = vld [vmem:[#allocation4 + $0x230] sm:$0xff]
    %v151 = vld [vmem:[#allocation4 + $0x238] sm:$0xff]
    %v152 = vld [vmem:[#allocation4 + $0x240] sm:$0xff]
    %v153 = vld [vmem:[#allocation4 + $0x248] sm:$0xff]
    %v154 = vld [vmem:[#allocation4 + $0x250] sm:$0xff]
    %v155 = vld [vmem:[#allocation4 + $0x258] sm:$0xff]
    %v156 = vld [vmem:[#allocation4 + $0x260] sm:$0xff]
    %v157 = vld [vmem:[#allocation4 + $0x268] sm:$0xff]
    %v158 = vld [vmem:[#allocation4 + $0x270] sm:$0xff]
    %v159 = vld [vmem:[#allocation4 + $0x278] sm:$0xff]
    %v160 = vld [vmem:[#allocation4 + $0x280] sm:$0xff]
    %v161 = vld [vmem:[#allocation4 + $0x288] sm:$0xff]
    %v162 = vld [vmem:[#allocation4 + $0x290] sm:$0xff]
    %v163 = vld [vmem:[#allocation4 + $0x298] sm:$0xff]
    %v164 = vld [vmem:[#allocation4 + $0x2a0] sm:$0xff]
    %v165 = vld [vmem:[#allocation4 + $0x2a8] sm:$0xff]
    %v166 = vld [vmem:[#allocation4 + $0x2b0] sm:$0xff]
    %v167 = vld [vmem:[#allocation4 + $0x2b8] sm:$0xff]
    %v168 = vld [vmem:[#allocation4 + $0x2c0] sm:$0xff]
    %v169 = vld [vmem:[#allocation4 + $0x2c8] sm:$0xff]
    %v170 = vld [vmem:[#allocation4 + $0x2d0] sm:$0xff]
    %v171 = vld [vmem:[#allocation4 + $0x2d8] sm:$0xff]
    %v172 = vld [vmem:[#allocation4 + $0x2e0] sm:$0xff]
    %v173 = vld [vmem:[#allocation4 + $0x2e8] sm:$0xff]
    %v174 = vld [vmem:[#allocation4 + $0x2f0] sm:$0xff]
    %v175 = vld [vmem:[#allocation4 + $0x2f8] sm:$0xff]
    %v176 = vld [vmem:[#allocation4 + $0x300] sm:$0xff]
    %v177 = vld [vmem:[#allocation4 + $0x308] sm:$0xff]
    %v178 = vld [vmem:[#allocation4 + $0x310] sm:$0xff]
    %v179 = vld [vmem:[#allocation4 + $0x318] sm:$0xff]
    %v180 = vld [vmem:[#allocation4 + $0x320] sm:$0xff]
    %v181 = vld [vmem:[#allocation4 + $0x328] sm:$0xff]
    %v182 = vld [vmem:[#allocation4 + $0x330] sm:$0xff]
    %v183 = vld [vmem:[#allocation4 + $0x338] sm:$0xff]
    %v184 = vld [vmem:[#allocation4 + $0x340] sm:$0xff]
    %v185 = vld [vmem:[#allocation4 + $0x348] sm:$0xff]
    %v186 = vld [vmem:[#allocation4 + $0x350] sm:$0xff]
    %v187 = vld [vmem:[#allocation4 + $0x358] sm:$0xff]
    %v188 = vld [vmem:[#allocation4 + $0x360] sm:$0xff]
    %v189 = vld [vmem:[#allocation4 + $0x368] sm:$0xff]
    %v190 = vld [vmem:[#allocation4 + $0x370] sm:$0xff]
    %v191 = vld [vmem:[#allocation4 + $0x378] sm:$0xff]
    %v192 = vld [vmem:[#allocation4 + $0x380] sm:$0xff]
    %v193 = vld [vmem:[#allocation4 + $0x388] sm:$0xff]
    %v194 = vld [vmem:[#allocation4 + $0x390] sm:$0xff]
    %v195 = vld [vmem:[#allocation4 + $0x398] sm:$0xff]
    %v196 = vld [vmem:[#allocation4 + $0x3a0] sm:$0xff]
    %v197 = vld [vmem:[#allocation4 + $0x3a8] sm:$0xff]
    %v198 = vld [vmem:[#allocation4 + $0x3b0] sm:$0xff]
    %v199 = vld [vmem:[#allocation4 + $0x3b8] sm:$0xff]
    %v200 = vld [vmem:[#allocation4 + $0x3c0] sm:$0xff]
    %v201 = vld [vmem:[#allocation4 + $0x3c8] sm:$0xff]
    %v202 = vld [vmem:[#allocation4 + $0x3d0] sm:$0xff]
    %v203 = vld [vmem:[#allocation4 + $0x3d8] sm:$0xff]
    %v204 = vld [vmem:[#allocation4 + $0x3e0] sm:$0xff]
    %v205 = vld [vmem:[#allocation4 + $0x3e8] sm:$0xff]
    %v206 = vld [vmem:[#allocation4 + $0x3f0] sm:$0xff]
    %v207 = vld [vmem:[#allocation4 + $0x3f8] sm:$0xff]
    %v208 = vld [vmem:[#allocation4 + $0x400] sm:$0xff]
    %v209 = vld [vmem:[#allocation4 + $0x408] sm:$0xff]
    %v210 = vld [vmem:[#allocation4 + $0x410] sm:$0xff]
    %v211 = vld [vmem:[#allocation4 + $0x418] sm:$0xff]
    %v212 = vld [vmem:[#allocation4 + $0x420] sm:$0xff]
    %v213 = vld [vmem:[#allocation4 + $0x428] sm:$0xff]
    %v214 = vld [vmem:[#allocation4 + $0x430] sm:$0xff]
    %v215 = vld [vmem:[#allocation4 + $0x438] sm:$0xff]
    %v216 = vld [vmem:[#allocation4 + $0x440] sm:$0xff]
    %v217 = vld [vmem:[#allocation4 + $0x448] sm:$0xff]
    %v218 = vld [vmem:[#allocation4 + $0x450] sm:$0xff]
    %v219 = vld [vmem:[#allocation4 + $0x458] sm:$0xff]
    %v220 = vld [vmem:[#allocation4 + $0x460] sm:$0xff]
    %v221 = vld [vmem:[#allocation4 + $0x468] sm:$0xff]
    %v222 = vld [vmem:[#allocation4 + $0x470] sm:$0xff]
    %v223 = vld [vmem:[#allocation4 + $0x478] sm:$0xff]
    %v224 = vld [vmem:[#allocation4 + $0x480] sm:$0xff]
    %v225 = vld [vmem:[#allocation4 + $0x488] sm:$0xff]
    %v226 = vld [vmem:[#allocation4 + $0x490] sm:$0xff]
    %v227 = vld [vmem:[#allocation4 + $0x498] sm:$0xff]
    %v228 = vld [vmem:[#allocation4 + $0x4a0] sm:$0xff]
    %v229 = vld [vmem:[#allocation4 + $0x4a8] sm:$0xff]
    %v230 = vld [vmem:[#allocation4 + $0x4b0] sm:$0xff]
    %v231 = vld [vmem:[#allocation4 + $0x4b8] sm:$0xff]
    %v232 = vld [vmem:[#allocation4 + $0x4c0] sm:$0xff]
    %v233 = vld [vmem:[#allocation4 + $0x4c8] sm:$0xff]
    %v234 = vld [vmem:[#allocation4 + $0x4d0] sm:$0xff]
    %v235 = vld [vmem:[#allocation4 + $0x4d8] sm:$0xff]
    %v236 = vld [vmem:[#allocation4 + $0x4e0] sm:$0xff]
    %v237 = vld [vmem:[#allocation4 + $0x4e8] sm:$0xff]
    %v238 = vld [vmem:[#allocation4 + $0x4f0] sm:$0xff]
    %v239 = vld [vmem:[#allocation4 + $0x4f8] sm:$0xff]
    %v240 = vld [vmem:[#allocation4 + $0x500] sm:$0xff]
    %v241 = vld [vmem:[#allocation4 + $0x508] sm:$0xff]
    %v242 = vld [vmem:[#allocation4 + $0x510] sm:$0xff]
    %v243 = vld [vmem:[#allocation4 + $0x518] sm:$0xff]
    %v244 = vld [vmem:[#allocation4 + $0x520] sm:$0xff]
    %v245 = vld [vmem:[#allocation4 + $0x528] sm:$0xff]
    %v246 = vld [vmem:[#allocation4 + $0x530] sm:$0xff]
    %v247 = vld [vmem:[#allocation4 + $0x538] sm:$0xff]
    %v248 = vld [vmem:[#allocation4 + $0x540] sm:$0xff]
    %v249 = vld [vmem:[#allocation4 + $0x548] sm:$0xff]
    %v250 = vld [vmem:[#allocation4 + $0x550] sm:$0xff]
    %v251 = vld [vmem:[#allocation4 + $0x558] sm:$0xff]
    %v252 = vld [vmem:[#allocation4 + $0x560] sm:$0xff]
    %v253 = vld [vmem:[#allocation4 + $0x568] sm:$0xff]
    %v254 = vld [vmem:[#allocation4 + $0x570] sm:$0xff]
    %v255 = vld [vmem:[#allocation4 + $0x578] sm:$0xff]
    %v256 = vld [vmem:[#allocation4 + $0x580] sm:$0xff]
    %v257 = vld [vmem:[#allocation4 + $0x588] sm:$0xff]
    %v258 = vld [vmem:[#allocation4 + $0x590] sm:$0xff]
    %v259 = vld [vmem:[#allocation4 + $0x598] sm:$0xff]
    %v260 = vld [vmem:[#allocation4 + $0x5a0] sm:$0xff]
    %v261 = vld [vmem:[#allocation4 + $0x5a8] sm:$0xff]
    %v262 = vld [vmem:[#allocation4 + $0x5b0] sm:$0xff]
    %v263 = vld [vmem:[#allocation4 + $0x5b8] sm:$0xff]
    %v264 = vld [vmem:[#allocation4 + $0x5c0] sm:$0xff]
    %v265 = vld [vmem:[#allocation4 + $0x5c8] sm:$0xff]
    %v266 = vld [vmem:[#allocation4 + $0x5d0] sm:$0xff]
    %v267 = vld [vmem:[#allocation4 + $0x5d8] sm:$0xff]
    %v268 = vld [vmem:[#allocation4 + $0x5e0] sm:$0xff]
    %v269 = vld [vmem:[#allocation4 + $0x5e8] sm:$0xff]
    %v270 = vld [vmem:[#allocation4 + $0x5f0] sm:$0xff]
    %v271 = vld [vmem:[#allocation4 + $0x5f8] sm:$0xff]
    %v272 = vld [vmem:[%s2] sm:$0xf]
    %v274 = vperm.slane %v272, 0
    %v275 = vperm.slane %v272, 1
    %v276 = vperm.slane %v272, 2
    %v277 = vperm.slane %v272, 3
    %v474 = vunpack.c.l.b16 %v80
    %v475 = vunpack.c.h.b16 %v80
    %v476 = vunpack.c.l.b16 %v81
    %v477 = vunpack.c.h.b16 %v81
    %v478 = vunpack.c.l.b16 %v82
    %v479 = vunpack.c.h.b16 %v82
    %v480 = vunpack.c.l.b16 %v83
    %v481 = vunpack.c.h.b16 %v83
    %v482 = vunpack.c.l.b16 %v84
    %v483 = vunpack.c.h.b16 %v84
    %v484 = vunpack.c.l.b16 %v85
    %v485 = vunpack.c.h.b16 %v85
    %v486 = vunpack.c.l.b16 %v86
    %v487 = vunpack.c.h.b16 %v86
    %v488 = vunpack.c.l.b16 %v87
    %v489 = vunpack.c.h.b16 %v87
    %v490 = vunpack.c.l.b16 %v88
    %v491 = vunpack.c.h.b16 %v88
    %v492 = vunpack.c.l.b16 %v89
    %v493 = vunpack.c.h.b16 %v89
    %v494 = vunpack.c.l.b16 %v90
    %v495 = vunpack.c.h.b16 %v90
    %v496 = vunpack.c.l.b16 %v91
    %v497 = vunpack.c.h.b16 %v91
    %v498 = vunpack.c.l.b16 %v92
    %v499 = vunpack.c.h.b16 %v92
    %v500 = vunpack.c.l.b16 %v93
    %v501 = vunpack.c.h.b16 %v93
    %v502 = vunpack.c.l.b16 %v94
    %v503 = vunpack.c.h.b16 %v94
    %v504 = vunpack.c.l.b16 %v95
    %v505 = vunpack.c.h.b16 %v95
    %v506 = vunpack.c.l.b16 %v96
    %v507 = vunpack.c.h.b16 %v96
    %v508 = vunpack.c.l.b16 %v97
    %v509 = vunpack.c.h.b16 %v97
    %v510 = vunpack.c.l.b16 %v98
    %v511 = vunpack.c.h.b16 %v98
    %v512 = vunpack.c.l.b16 %v99
    %v513 = vunpack.c.h.b16 %v99
    %v514 = vunpack.c.l.b16 %v100
    %v515 = vunpack.c.h.b16 %v100
    %v516 = vunpack.c.l.b16 %v101
    %v517 = vunpack.c.h.b16 %v101
    %v518 = vunpack.c.l.b16 %v102
    %v519 = vunpack.c.h.b16 %v102
    %v520 = vunpack.c.l.b16 %v103
    %v521 = vunpack.c.h.b16 %v103
    %v522 = vunpack.c.l.b16 %v104
    %v523 = vunpack.c.h.b16 %v104
    %v524 = vunpack.c.l.b16 %v105
    %v525 = vunpack.c.h.b16 %v105
    %v526 = vunpack.c.l.b16 %v106
    %v527 = vunpack.c.h.b16 %v106
    %v528 = vunpack.c.l.b16 %v107
    %v529 = vunpack.c.h.b16 %v107
    %v530 = vunpack.c.l.b16 %v108
    %v531 = vunpack.c.h.b16 %v108
    %v532 = vunpack.c.l.b16 %v109
    %v533 = vunpack.c.h.b16 %v109
    %v534 = vunpack.c.l.b16 %v110
    %v535 = vunpack.c.h.b16 %v110
    %v536 = vunpack.c.l.b16 %v111
    %v537 = vunpack.c.h.b16 %v111
    %v538 = vunpack.c.l.b16 %v112
    %v539 = vunpack.c.h.b16 %v112
    %v540 = vunpack.c.l.b16 %v113
    %v541 = vunpack.c.h.b16 %v113
    %v542 = vunpack.c.l.b16 %v114
    %v543 = vunpack.c.h.b16 %v114
    %v544 = vunpack.c.l.b16 %v115
    %v545 = vunpack.c.h.b16 %v115
    %v546 = vunpack.c.l.b16 %v116
    %v547 = vunpack.c.h.b16 %v116
    %v548 = vunpack.c.l.b16 %v117
    %v549 = vunpack.c.h.b16 %v117
    %v550 = vunpack.c.l.b16 %v118
    %v551 = vunpack.c.h.b16 %v118
    %v552 = vunpack.c.l.b16 %v119
    %v553 = vunpack.c.h.b16 %v119
    %v554 = vunpack.c.l.b16 %v120
    %v555 = vunpack.c.h.b16 %v120
    %v556 = vunpack.c.l.b16 %v121
    %v557 = vunpack.c.h.b16 %v121
    %v558 = vunpack.c.l.b16 %v122
    %v559 = vunpack.c.h.b16 %v122
    %v560 = vunpack.c.l.b16 %v123
    %v561 = vunpack.c.h.b16 %v123
    %v562 = vunpack.c.l.b16 %v124
    %v563 = vunpack.c.h.b16 %v124
    %v564 = vunpack.c.l.b16 %v125
    %v565 = vunpack.c.h.b16 %v125
    %v566 = vunpack.c.l.b16 %v126
    %v567 = vunpack.c.h.b16 %v126
    %v568 = vunpack.c.l.b16 %v127
    %v569 = vunpack.c.h.b16 %v127
    %v570 = vunpack.c.l.b16 %v128
    %v571 = vunpack.c.h.b16 %v128
    %v572 = vunpack.c.l.b16 %v129
    %v573 = vunpack.c.h.b16 %v129
    %v574 = vunpack.c.l.b16 %v130
    %v575 = vunpack.c.h.b16 %v130
    %v576 = vunpack.c.l.b16 %v131
    %v577 = vunpack.c.h.b16 %v131
    %v578 = vunpack.c.l.b16 %v132
    %v579 = vunpack.c.h.b16 %v132
    %v580 = vunpack.c.l.b16 %v133
    %v581 = vunpack.c.h.b16 %v133
    %v582 = vunpack.c.l.b16 %v134
    %v583 = vunpack.c.h.b16 %v134
    %v584 = vunpack.c.l.b16 %v135
    %v585 = vunpack.c.h.b16 %v135
    %v586 = vunpack.c.l.b16 %v136
    %v587 = vunpack.c.h.b16 %v136
    %v588 = vunpack.c.l.b16 %v137
    %v589 = vunpack.c.h.b16 %v137
    %v590 = vunpack.c.l.b16 %v138
    %v591 = vunpack.c.h.b16 %v138
    %v592 = vunpack.c.l.b16 %v139
    %v593 = vunpack.c.h.b16 %v139
    %v594 = vunpack.c.l.b16 %v140
    %v595 = vunpack.c.h.b16 %v140
    %v596 = vunpack.c.l.b16 %v141
    %v597 = vunpack.c.h.b16 %v141
    %v598 = vunpack.c.l.b16 %v142
    %v599 = vunpack.c.h.b16 %v142
    %v600 = vunpack.c.l.b16 %v143
    %v601 = vunpack.c.h.b16 %v143
    %v602 = vunpack.c.l.b16 %v144
    %v603 = vunpack.c.h.b16 %v144
    %v604 = vunpack.c.l.b16 %v145
    %v605 = vunpack.c.h.b16 %v145
    %v606 = vunpack.c.l.b16 %v146
    %v607 = vunpack.c.h.b16 %v146
    %v608 = vunpack.c.l.b16 %v147
    %v609 = vunpack.c.h.b16 %v147
    %v610 = vunpack.c.l.b16 %v148
    %v611 = vunpack.c.h.b16 %v148
    %v612 = vunpack.c.l.b16 %v149
    %v613 = vunpack.c.h.b16 %v149
    %v614 = vunpack.c.l.b16 %v150
    %v615 = vunpack.c.h.b16 %v150
    %v616 = vunpack.c.l.b16 %v151
    %v617 = vunpack.c.h.b16 %v151
    %v618 = vunpack.c.l.b16 %v152
    %v619 = vunpack.c.h.b16 %v152
    %v620 = vunpack.c.l.b16 %v153
    %v621 = vunpack.c.h.b16 %v153
    %v622 = vunpack.c.l.b16 %v154
    %v623 = vunpack.c.h.b16 %v154
    %v624 = vunpack.c.l.b16 %v155
    %v625 = vunpack.c.h.b16 %v155
    %v626 = vunpack.c.l.b16 %v156
    %v627 = vunpack.c.h.b16 %v156
    %v628 = vunpack.c.l.b16 %v157
    %v629 = vunpack.c.h.b16 %v157
    %v630 = vunpack.c.l.b16 %v158
    %v631 = vunpack.c.h.b16 %v158
    %v632 = vunpack.c.l.b16 %v159
    %v633 = vunpack.c.h.b16 %v159
    %v634 = vunpack.c.l.b16 %v160
    %v635 = vunpack.c.h.b16 %v160
    %v636 = vunpack.c.l.b16 %v161
    %v637 = vunpack.c.h.b16 %v161
    %v638 = vunpack.c.l.b16 %v162
    %v639 = vunpack.c.h.b16 %v162
    %v640 = vunpack.c.l.b16 %v163
    %v641 = vunpack.c.h.b16 %v163
    %v642 = vunpack.c.l.b16 %v164
    %v643 = vunpack.c.h.b16 %v164
    %v644 = vunpack.c.l.b16 %v165
    %v645 = vunpack.c.h.b16 %v165
    %v646 = vunpack.c.l.b16 %v166
    %v647 = vunpack.c.h.b16 %v166
    %v648 = vunpack.c.l.b16 %v167
    %v649 = vunpack.c.h.b16 %v167
    %v650 = vunpack.c.l.b16 %v168
    %v651 = vunpack.c.h.b16 %v168
    %v652 = vunpack.c.l.b16 %v169
    %v653 = vunpack.c.h.b16 %v169
    %v654 = vunpack.c.l.b16 %v170
    %v655 = vunpack.c.h.b16 %v170
    %v656 = vunpack.c.l.b16 %v171
    %v657 = vunpack.c.h.b16 %v171
    %v658 = vunpack.c.l.b16 %v172
    %v659 = vunpack.c.h.b16 %v172
    %v660 = vunpack.c.l.b16 %v173
    %v661 = vunpack.c.h.b16 %v173
    %v662 = vunpack.c.l.b16 %v174
    %v663 = vunpack.c.h.b16 %v174
    %v664 = vunpack.c.l.b16 %v175
    %v665 = vunpack.c.h.b16 %v175
    %v666 = vunpack.c.l.b16 %v176
    %v667 = vunpack.c.h.b16 %v176
    %v668 = vunpack.c.l.b16 %v177
    %v669 = vunpack.c.h.b16 %v177
    %v670 = vunpack.c.l.b16 %v178
    %v671 = vunpack.c.h.b16 %v178
    %v672 = vunpack.c.l.b16 %v179
    %v673 = vunpack.c.h.b16 %v179
    %v674 = vunpack.c.l.b16 %v180
    %v675 = vunpack.c.h.b16 %v180
    %v676 = vunpack.c.l.b16 %v181
    %v677 = vunpack.c.h.b16 %v181
    %v678 = vunpack.c.l.b16 %v182
    %v679 = vunpack.c.h.b16 %v182
    %v680 = vunpack.c.l.b16 %v183
    %v681 = vunpack.c.h.b16 %v183
    %v682 = vunpack.c.l.b16 %v184
    %v683 = vunpack.c.h.b16 %v184
    %v684 = vunpack.c.l.b16 %v185
    %v685 = vunpack.c.h.b16 %v185
    %v686 = vunpack.c.l.b16 %v186
    %v687 = vunpack.c.h.b16 %v186
    %v688 = vunpack.c.l.b16 %v187
    %v689 = vunpack.c.h.b16 %v187
    %v690 = vunpack.c.l.b16 %v188
    %v691 = vunpack.c.h.b16 %v188
    %v692 = vunpack.c.l.b16 %v189
    %v693 = vunpack.c.h.b16 %v189
    %v694 = vunpack.c.l.b16 %v190
    %v695 = vunpack.c.h.b16 %v190
    %v696 = vunpack.c.l.b16 %v191
    %v697 = vunpack.c.h.b16 %v191
    %v698 = vunpack.c.l.b16 %v192
    %v699 = vunpack.c.h.b16 %v192
    %v700 = vunpack.c.l.b16 %v193
    %v701 = vunpack.c.h.b16 %v193
    %v702 = vunpack.c.l.b16 %v194
    %v703 = vunpack.c.h.b16 %v194
    %v704 = vunpack.c.l.b16 %v195
    %v705 = vunpack.c.h.b16 %v195
    %v706 = vunpack.c.l.b16 %v196
    %v707 = vunpack.c.h.b16 %v196
    %v708 = vunpack.c.l.b16 %v197
    %v709 = vunpack.c.h.b16 %v197
    %v710 = vunpack.c.l.b16 %v198
    %v711 = vunpack.c.h.b16 %v198
    %v712 = vunpack.c.l.b16 %v199
    %v713 = vunpack.c.h.b16 %v199
    %v714 = vunpack.c.l.b16 %v200
    %v715 = vunpack.c.h.b16 %v200
    %v716 = vunpack.c.l.b16 %v201
    %v717 = vunpack.c.h.b16 %v201
    %v718 = vunpack.c.l.b16 %v202
    %v719 = vunpack.c.h.b16 %v202
    %v720 = vunpack.c.l.b16 %v203
    %v721 = vunpack.c.h.b16 %v203
    %v722 = vunpack.c.l.b16 %v204
    %v723 = vunpack.c.h.b16 %v204
    %v724 = vunpack.c.l.b16 %v205
    %v725 = vunpack.c.h.b16 %v205
    %v726 = vunpack.c.l.b16 %v206
    %v727 = vunpack.c.h.b16 %v206
    %v728 = vunpack.c.l.b16 %v207
    %v729 = vunpack.c.h.b16 %v207
    %v730 = vunpack.c.l.b16 %v208
    %v731 = vunpack.c.h.b16 %v208
    %v732 = vunpack.c.l.b16 %v209
    %v733 = vunpack.c.h.b16 %v209
    %v734 = vunpack.c.l.b16 %v210
    %v735 = vunpack.c.h.b16 %v210
    %v736 = vunpack.c.l.b16 %v211
    %v737 = vunpack.c.h.b16 %v211
    %v738 = vunpack.c.l.b16 %v212
    %v739 = vunpack.c.h.b16 %v212
    %v740 = vunpack.c.l.b16 %v213
    %v741 = vunpack.c.h.b16 %v213
    %v742 = vunpack.c.l.b16 %v214
    %v743 = vunpack.c.h.b16 %v214
    %v744 = vunpack.c.l.b16 %v215
    %v745 = vunpack.c.h.b16 %v215
    %v746 = vunpack.c.l.b16 %v216
    %v747 = vunpack.c.h.b16 %v216
    %v748 = vunpack.c.l.b16 %v217
    %v749 = vunpack.c.h.b16 %v217
    %v750 = vunpack.c.l.b16 %v218
    %v751 = vunpack.c.h.b16 %v218
    %v752 = vunpack.c.l.b16 %v219
    %v753 = vunpack.c.h.b16 %v219
    %v754 = vunpack.c.l.b16 %v220
    %v755 = vunpack.c.h.b16 %v220
    %v756 = vunpack.c.l.b16 %v221
    %v757 = vunpack.c.h.b16 %v221
    %v758 = vunpack.c.l.b16 %v222
    %v759 = vunpack.c.h.b16 %v222
    %v760 = vunpack.c.l.b16 %v223
    %v761 = vunpack.c.h.b16 %v223
    %v762 = vunpack.c.l.b16 %v224
    %v763 = vunpack.c.h.b16 %v224
    %v764 = vunpack.c.l.b16 %v225
    %v765 = vunpack.c.h.b16 %v225
    %v766 = vunpack.c.l.b16 %v226
    %v767 = vunpack.c.h.b16 %v226
    %v768 = vunpack.c.l.b16 %v227
    %v769 = vunpack.c.h.b16 %v227
    %v770 = vunpack.c.l.b16 %v228
    %v771 = vunpack.c.h.b16 %v228
    %v772 = vunpack.c.l.b16 %v229
    %v773 = vunpack.c.h.b16 %v229
    %v774 = vunpack.c.l.b16 %v230
    %v775 = vunpack.c.h.b16 %v230
    %v776 = vunpack.c.l.b16 %v231
    %v777 = vunpack.c.h.b16 %v231
    %v778 = vunpack.c.l.b16 %v232
    %v779 = vunpack.c.h.b16 %v232
    %v780 = vunpack.c.l.b16 %v233
    %v781 = vunpack.c.h.b16 %v233
    %v782 = vunpack.c.l.b16 %v234
    %v783 = vunpack.c.h.b16 %v234
    %v784 = vunpack.c.l.b16 %v235
    %v785 = vunpack.c.h.b16 %v235
    %v786 = vunpack.c.l.b16 %v236
    %v787 = vunpack.c.h.b16 %v236
    %v788 = vunpack.c.l.b16 %v237
    %v789 = vunpack.c.h.b16 %v237
    %v790 = vunpack.c.l.b16 %v238
    %v791 = vunpack.c.h.b16 %v238
    %v792 = vunpack.c.l.b16 %v239
    %v793 = vunpack.c.h.b16 %v239
    %v794 = vunpack.c.l.b16 %v240
    %v795 = vunpack.c.h.b16 %v240
    %v796 = vunpack.c.l.b16 %v241
    %v797 = vunpack.c.h.b16 %v241
    %v798 = vunpack.c.l.b16 %v242
    %v799 = vunpack.c.h.b16 %v242
    %v800 = vunpack.c.l.b16 %v243
    %v801 = vunpack.c.h.b16 %v243
    %v802 = vunpack.c.l.b16 %v244
    %v803 = vunpack.c.h.b16 %v244
    %v804 = vunpack.c.l.b16 %v245
    %v805 = vunpack.c.h.b16 %v245
    %v806 = vunpack.c.l.b16 %v246
    %v807 = vunpack.c.h.b16 %v246
    %v808 = vunpack.c.l.b16 %v247
    %v809 = vunpack.c.h.b16 %v247
    %v810 = vunpack.c.l.b16 %v248
    %v811 = vunpack.c.h.b16 %v248
    %v812 = vunpack.c.l.b16 %v249
    %v813 = vunpack.c.h.b16 %v249
    %v814 = vunpack.c.l.b16 %v250
    %v815 = vunpack.c.h.b16 %v250
    %v816 = vunpack.c.l.b16 %v251
    %v817 = vunpack.c.h.b16 %v251
    %v818 = vunpack.c.l.b16 %v252
    %v819 = vunpack.c.h.b16 %v252
    %v820 = vunpack.c.l.b16 %v253
    %v821 = vunpack.c.h.b16 %v253
    %v822 = vunpack.c.l.b16 %v254
    %v823 = vunpack.c.h.b16 %v254
    %v824 = vunpack.c.l.b16 %v255
    %v825 = vunpack.c.h.b16 %v255
    %v826 = vunpack.c.l.b16 %v256
    %v827 = vunpack.c.h.b16 %v256
    %v828 = vunpack.c.l.b16 %v257
    %v829 = vunpack.c.h.b16 %v257
    %v830 = vunpack.c.l.b16 %v258
    %v831 = vunpack.c.h.b16 %v258
    %v832 = vunpack.c.l.b16 %v259
    %v833 = vunpack.c.h.b16 %v259
    %v834 = vunpack.c.l.b16 %v260
    %v835 = vunpack.c.h.b16 %v260
    %v836 = vunpack.c.l.b16 %v261
    %v837 = vunpack.c.h.b16 %v261
    %v838 = vunpack.c.l.b16 %v262
    %v839 = vunpack.c.h.b16 %v262
    %v840 = vunpack.c.l.b16 %v263
    %v841 = vunpack.c.h.b16 %v263
    %v842 = vunpack.c.l.b16 %v264
    %v843 = vunpack.c.h.b16 %v264
    %v844 = vunpack.c.l.b16 %v265
    %v845 = vunpack.c.h.b16 %v265
    %v846 = vunpack.c.l.b16 %v266
    %v847 = vunpack.c.h.b16 %v266
    %v848 = vunpack.c.l.b16 %v267
    %v849 = vunpack.c.h.b16 %v267
    %v850 = vunpack.c.l.b16 %v268
    %v851 = vunpack.c.h.b16 %v268
    %v852 = vunpack.c.l.b16 %v269
    %v853 = vunpack.c.h.b16 %v269
    %v854 = vunpack.c.l.b16 %v270
    %v855 = vunpack.c.h.b16 %v270
    %v856 = vunpack.c.l.b16 %v271
    %v857 = vunpack.c.h.b16 %v271
    %v858 = vpack.c.b16 %v478, %v474
    %v859 = vpack.c.b16 %v479, %v475
    %v860 = vpack.c.b16 %v480, %v476
    %v861 = vpack.c.b16 %v481, %v477
    %v862 = vpack.c.b16 %v486, %v482
    %v863 = vpack.c.b16 %v487, %v483
    %v864 = vpack.c.b16 %v488, %v484
    %v865 = vpack.c.b16 %v489, %v485
    %v866 = vpack.c.b16 %v494, %v490
    %v867 = vpack.c.b16 %v495, %v491
    %v868 = vpack.c.b16 %v496, %v492
    %v869 = vpack.c.b16 %v497, %v493
    %v870 = vpack.c.b16 %v502, %v498
    %v871 = vpack.c.b16 %v503, %v499
    %v872 = vpack.c.b16 %v504, %v500
    %v873 = vpack.c.b16 %v505, %v501
    %v874 = vpack.c.b16 %v510, %v506
    %v875 = vpack.c.b16 %v511, %v507
    %v876 = vpack.c.b16 %v512, %v508
    %v877 = vpack.c.b16 %v513, %v509
    %v878 = vpack.c.b16 %v518, %v514
    %v879 = vpack.c.b16 %v519, %v515
    %v880 = vpack.c.b16 %v520, %v516
    %v881 = vpack.c.b16 %v521, %v517
    %v882 = vpack.c.b16 %v526, %v522
    %v883 = vpack.c.b16 %v527, %v523
    %v884 = vpack.c.b16 %v528, %v524
    %v885 = vpack.c.b16 %v529, %v525
    %v886 = vpack.c.b16 %v534, %v530
    %v887 = vpack.c.b16 %v535, %v531
    %v888 = vpack.c.b16 %v536, %v532
    %v889 = vpack.c.b16 %v537, %v533
    %v890 = vpack.c.b16 %v542, %v538
    %v891 = vpack.c.b16 %v543, %v539
    %v892 = vpack.c.b16 %v544, %v540
    %v893 = vpack.c.b16 %v545, %v541
    %v894 = vpack.c.b16 %v550, %v546
    %v895 = vpack.c.b16 %v551, %v547
    %v896 = vpack.c.b16 %v552, %v548
    %v897 = vpack.c.b16 %v553, %v549
    %v898 = vpack.c.b16 %v558, %v554
    %v899 = vpack.c.b16 %v559, %v555
    %v900 = vpack.c.b16 %v560, %v556
    %v901 = vpack.c.b16 %v561, %v557
    %v902 = vpack.c.b16 %v566, %v562
    %v903 = vpack.c.b16 %v567, %v563
    %v904 = vpack.c.b16 %v568, %v564
    %v905 = vpack.c.b16 %v569, %v565
    %v906 = vpack.c.b16 %v574, %v570
    %v907 = vpack.c.b16 %v575, %v571
    %v908 = vpack.c.b16 %v576, %v572
    %v909 = vpack.c.b16 %v577, %v573
    %v910 = vpack.c.b16 %v582, %v578
    %v911 = vpack.c.b16 %v583, %v579
    %v912 = vpack.c.b16 %v584, %v580
    %v913 = vpack.c.b16 %v585, %v581
    %v914 = vpack.c.b16 %v590, %v586
    %v915 = vpack.c.b16 %v591, %v587
    %v916 = vpack.c.b16 %v592, %v588
    %v917 = vpack.c.b16 %v593, %v589
    %v918 = vpack.c.b16 %v598, %v594
    %v919 = vpack.c.b16 %v599, %v595
    %v920 = vpack.c.b16 %v600, %v596
    %v921 = vpack.c.b16 %v601, %v597
    %v922 = vpack.c.b16 %v606, %v602
    %v923 = vpack.c.b16 %v607, %v603
    %v924 = vpack.c.b16 %v608, %v604
    %v925 = vpack.c.b16 %v609, %v605
    %v926 = vpack.c.b16 %v614, %v610
    %v927 = vpack.c.b16 %v615, %v611
    %v928 = vpack.c.b16 %v616, %v612
    %v929 = vpack.c.b16 %v617, %v613
    %v930 = vpack.c.b16 %v622, %v618
    %v931 = vpack.c.b16 %v623, %v619
    %v932 = vpack.c.b16 %v624, %v620
    %v933 = vpack.c.b16 %v625, %v621
    %v934 = vpack.c.b16 %v630, %v626
    %v935 = vpack.c.b16 %v631, %v627
    %v936 = vpack.c.b16 %v632, %v628
    %v937 = vpack.c.b16 %v633, %v629
    %v938 = vpack.c.b16 %v638, %v634
    %v939 = vpack.c.b16 %v639, %v635
    %v940 = vpack.c.b16 %v640, %v636
    %v941 = vpack.c.b16 %v641, %v637
    %v942 = vpack.c.b16 %v646, %v642
    %v943 = vpack.c.b16 %v647, %v643
    %v944 = vpack.c.b16 %v648, %v644
    %v945 = vpack.c.b16 %v649, %v645
    %v946 = vpack.c.b16 %v654, %v650
    %v947 = vpack.c.b16 %v655, %v651
    %v948 = vpack.c.b16 %v656, %v652
    %v949 = vpack.c.b16 %v657, %v653
    %v950 = vpack.c.b16 %v662, %v658
    %v951 = vpack.c.b16 %v663, %v659
    %v952 = vpack.c.b16 %v664, %v660
    %v953 = vpack.c.b16 %v665, %v661
    %v954 = vpack.c.b16 %v670, %v666
    %v955 = vpack.c.b16 %v671, %v667
    %v956 = vpack.c.b16 %v672, %v668
    %v957 = vpack.c.b16 %v673, %v669
    %v958 = vpack.c.b16 %v678, %v674
    %v959 = vpack.c.b16 %v679, %v675
    %v960 = vpack.c.b16 %v680, %v676
    %v961 = vpack.c.b16 %v681, %v677
    %v962 = vpack.c.b16 %v686, %v682
    %v963 = vpack.c.b16 %v687, %v683
    %v964 = vpack.c.b16 %v688, %v684
    %v965 = vpack.c.b16 %v689, %v685
    %v966 = vpack.c.b16 %v694, %v690
    %v967 = vpack.c.b16 %v695, %v691
    %v968 = vpack.c.b16 %v696, %v692
    %v969 = vpack.c.b16 %v697, %v693
    %v970 = vpack.c.b16 %v702, %v698
    %v971 = vpack.c.b16 %v703, %v699
    %v972 = vpack.c.b16 %v704, %v700
    %v973 = vpack.c.b16 %v705, %v701
    %v974 = vpack.c.b16 %v710, %v706
    %v975 = vpack.c.b16 %v711, %v707
    %v976 = vpack.c.b16 %v712, %v708
    %v977 = vpack.c.b16 %v713, %v709
    %v978 = vpack.c.b16 %v718, %v714
    %v979 = vpack.c.b16 %v719, %v715
    %v980 = vpack.c.b16 %v720, %v716
    %v981 = vpack.c.b16 %v721, %v717
    %v982 = vpack.c.b16 %v726, %v722
    %v983 = vpack.c.b16 %v727, %v723
    %v984 = vpack.c.b16 %v728, %v724
    %v985 = vpack.c.b16 %v729, %v725
    %v986 = vpack.c.b16 %v734, %v730
    %v987 = vpack.c.b16 %v735, %v731
    %v988 = vpack.c.b16 %v736, %v732
    %v989 = vpack.c.b16 %v737, %v733
    %v990 = vpack.c.b16 %v742, %v738
    %v991 = vpack.c.b16 %v743, %v739
    %v992 = vpack.c.b16 %v744, %v740
    %v993 = vpack.c.b16 %v745, %v741
    %v994 = vpack.c.b16 %v750, %v746
    %v995 = vpack.c.b16 %v751, %v747
    %v996 = vpack.c.b16 %v752, %v748
    %v997 = vpack.c.b16 %v753, %v749
    %v998 = vpack.c.b16 %v758, %v754
    %v999 = vpack.c.b16 %v759, %v755
    %v1000 = vpack.c.b16 %v760, %v756
    %v1001 = vpack.c.b16 %v761, %v757
    %v1002 = vpack.c.b16 %v766, %v762
    %v1003 = vpack.c.b16 %v767, %v763
    %v1004 = vpack.c.b16 %v768, %v764
    %v1005 = vpack.c.b16 %v769, %v765
    %v1006 = vpack.c.b16 %v774, %v770
    %v1007 = vpack.c.b16 %v775, %v771
    %v1008 = vpack.c.b16 %v776, %v772
    %v1009 = vpack.c.b16 %v777, %v773
    %v1010 = vpack.c.b16 %v782, %v778
    %v1011 = vpack.c.b16 %v783, %v779
    %v1012 = vpack.c.b16 %v784, %v780
    %v1013 = vpack.c.b16 %v785, %v781
    %v1014 = vpack.c.b16 %v790, %v786
    %v1015 = vpack.c.b16 %v791, %v787
    %v1016 = vpack.c.b16 %v792, %v788
    %v1017 = vpack.c.b16 %v793, %v789
    %v1018 = vpack.c.b16 %v798, %v794
    %v1019 = vpack.c.b16 %v799, %v795
    %v1020 = vpack.c.b16 %v800, %v796
    %v1021 = vpack.c.b16 %v801, %v797
    %v1022 = vpack.c.b16 %v806, %v802
    %v1023 = vpack.c.b16 %v807, %v803
    %v1024 = vpack.c.b16 %v808, %v804
    %v1025 = vpack.c.b16 %v809, %v805
    %v1026 = vpack.c.b16 %v814, %v810
    %v1027 = vpack.c.b16 %v815, %v811
    %v1028 = vpack.c.b16 %v816, %v812
    %v1029 = vpack.c.b16 %v817, %v813
    %v1030 = vpack.c.b16 %v822, %v818
    %v1031 = vpack.c.b16 %v823, %v819
    %v1032 = vpack.c.b16 %v824, %v820
    %v1033 = vpack.c.b16 %v825, %v821
    %v1034 = vpack.c.b16 %v830, %v826
    %v1035 = vpack.c.b16 %v831, %v827
    %v1036 = vpack.c.b16 %v832, %v828
    %v1037 = vpack.c.b16 %v833, %v829
    %v1038 = vpack.c.b16 %v838, %v834
    %v1039 = vpack.c.b16 %v839, %v835
    %v1040 = vpack.c.b16 %v840, %v836
    %v1041 = vpack.c.b16 %v841, %v837
    %v1042 = vpack.c.b16 %v846, %v842
    %v1043 = vpack.c.b16 %v847, %v843
    %v1044 = vpack.c.b16 %v848, %v844
    %v1045 = vpack.c.b16 %v849, %v845
    %v1046 = vpack.c.b16 %v854, %v850
    %v1047 = vpack.c.b16 %v855, %v851
    %v1048 = vpack.c.b16 %v856, %v852
    %v1049 = vpack.c.b16 %v857, %v853
    %1242 = vmatpush.bf16.msra.mxu0 %v886
    %1243 = vmatpush.bf16.msra.mxu0 %v882
    %1244 = vmatpush.bf16.msra.mxu0 %v878
    %1245 = vmatpush.bf16.msra.mxu0 %v874
    %1246 = vmatpush.bf16.msra.mxu0 %v870
    %1247 = vmatpush.bf16.msra.mxu0 %v866
    %1248 = vmatpush.bf16.msra.mxu0 %v862
    %1249 = vmatpush.bf16.msra.mxu0 %v858
    %1250 = vmatmul.bf16.gmra.mxu0 %v74
    %v1251 = vpop.f32.mrf.mxu0
    %v1252 = vadd.f32 %v274, %v1251
    %v1253 = vpop.f32.mrf.mxu0
    %v1254 = vadd.f32 %v274, %v1253
    %1255 = vdwg.mxu0
    %1256 = vmatpush.bf16.msra.mxu0 %v918
    %1257 = vmatpush.bf16.msra.mxu0 %v914
    %1258 = vmatpush.bf16.msra.mxu0 %v910
    %1259 = vmatpush.bf16.msra.mxu0 %v906
    %1260 = vmatpush.bf16.msra.mxu0 %v902
    %1261 = vmatpush.bf16.msra.mxu0 %v898
    %1262 = vmatpush.bf16.msra.mxu0 %v894
    %1263 = vmatpush.bf16.msra.mxu0 %v890
    %1264 = vmatmul.bf16.gmra.mxu0 %v75
    %v1265 = vpop.f32.mrf.mxu0
    %v1266 = vadd.f32 %v1252, %v1265
    %v1267 = vpop.f32.mrf.mxu0
    %v1268 = vadd.f32 %v1254, %v1267
    %1269 = vdwg.mxu0
    %1270 = vmatpush.bf16.msra.mxu0 %v950
    %1271 = vmatpush.bf16.msra.mxu0 %v946
    %1272 = vmatpush.bf16.msra.mxu0 %v942
    %1273 = vmatpush.bf16.msra.mxu0 %v938
    %1274 = vmatpush.bf16.msra.mxu0 %v934
    %1275 = vmatpush.bf16.msra.mxu0 %v930
    %1276 = vmatpush.bf16.msra.mxu0 %v926
    %1277 = vmatpush.bf16.msra.mxu0 %v922
    %1278 = vmatmul.bf16.gmra.mxu0 %v76
    %v1279 = vpop.f32.mrf.mxu0
    %v1280 = vadd.f32 %v1266, %v1279
    %v1281 = vpop.f32.mrf.mxu0
    %v1282 = vadd.f32 %v1268, %v1281
    %1283 = vdwg.mxu0
    %1284 = vmatpush.bf16.msra.mxu0 %v982
    %1285 = vmatpush.bf16.msra.mxu0 %v978
    %1286 = vmatpush.bf16.msra.mxu0 %v974
    %1287 = vmatpush.bf16.msra.mxu0 %v970
    %1288 = vmatpush.bf16.msra.mxu0 %v966
    %1289 = vmatpush.bf16.msra.mxu0 %v962
    %1290 = vmatpush.bf16.msra.mxu0 %v958
    %1291 = vmatpush.bf16.msra.mxu0 %v954
    %1292 = vmatmul.bf16.gmra.mxu0 %v77
    %v1293 = vpop.f32.mrf.mxu0
    %v1294 = vadd.f32 %v1280, %v1293
    %v1295 = vpop.f32.mrf.mxu0
    %v1296 = vadd.f32 %v1282, %v1295
    %1297 = vdwg.mxu0
    %1298 = vmatpush.bf16.msra.mxu0 %v1014
    %1299 = vmatpush.bf16.msra.mxu0 %v1010
    %1300 = vmatpush.bf16.msra.mxu0 %v1006
    %1301 = vmatpush.bf16.msra.mxu0 %v1002
    %1302 = vmatpush.bf16.msra.mxu0 %v998
    %1303 = vmatpush.bf16.msra.mxu0 %v994
    %1304 = vmatpush.bf16.msra.mxu0 %v990
    %1305 = vmatpush.bf16.msra.mxu0 %v986
    %1306 = vmatmul.bf16.gmra.mxu0 %v78
    %v1307 = vpop.f32.mrf.mxu0
    %v1308 = vadd.f32 %v1294, %v1307
    %v1309 = vpop.f32.mrf.mxu0
    %v1310 = vadd.f32 %v1296, %v1309
    %1311 = vdwg.mxu0
    %1312 = vmatpush.bf16.msra.mxu0 %v1046
    %1313 = vmatpush.bf16.msra.mxu0 %v1042
    %1314 = vmatpush.bf16.msra.mxu0 %v1038
    %1315 = vmatpush.bf16.msra.mxu0 %v1034
    %1316 = vmatpush.bf16.msra.mxu0 %v1030
    %1317 = vmatpush.bf16.msra.mxu0 %v1026
    %1318 = vmatpush.bf16.msra.mxu0 %v1022
    %1319 = vmatpush.bf16.msra.mxu0 %v1018
    %1320 = vmatmul.bf16.gmra.mxu0 %v79
    %v1321 = vpop.f32.mrf.mxu0
    %v1322 = vadd.f32 %v1308, %v1321
    %v1323 = vpop.f32.mrf.mxu0
    %v1324 = vadd.f32 %v1310, %v1323
    %1325 = vdwg.mxu0
    %1326 = vmatpush.bf16.msra.mxu0 %v887
    %1327 = vmatpush.bf16.msra.mxu0 %v883
    %1328 = vmatpush.bf16.msra.mxu0 %v879
    %1329 = vmatpush.bf16.msra.mxu0 %v875
    %1330 = vmatpush.bf16.msra.mxu0 %v871
    %1331 = vmatpush.bf16.msra.mxu0 %v867
    %1332 = vmatpush.bf16.msra.mxu0 %v863
    %1333 = vmatpush.bf16.msra.mxu0 %v859
    %1334 = vmatmul.bf16.gmra.mxu0 %v74
    %v1335 = vpop.f32.mrf.mxu0
    %v1336 = vadd.f32 %v275, %v1335
    %v1337 = vpop.f32.mrf.mxu0
    %v1338 = vadd.f32 %v275, %v1337
    %1339 = vdwg.mxu0
    %1340 = vmatpush.bf16.msra.mxu0 %v919
    %1341 = vmatpush.bf16.msra.mxu0 %v915
    %1342 = vmatpush.bf16.msra.mxu0 %v911
    %1343 = vmatpush.bf16.msra.mxu0 %v907
    %1344 = vmatpush.bf16.msra.mxu0 %v903
    %1345 = vmatpush.bf16.msra.mxu0 %v899
    %1346 = vmatpush.bf16.msra.mxu0 %v895
    %1347 = vmatpush.bf16.msra.mxu0 %v891
    %1348 = vmatmul.bf16.gmra.mxu0 %v75
    %v1349 = vpop.f32.mrf.mxu0
    %v1350 = vadd.f32 %v1336, %v1349
    %v1351 = vpop.f32.mrf.mxu0
    %v1352 = vadd.f32 %v1338, %v1351
    %1353 = vdwg.mxu0
    %1354 = vmatpush.bf16.msra.mxu0 %v951
    %1355 = vmatpush.bf16.msra.mxu0 %v947
    %1356 = vmatpush.bf16.msra.mxu0 %v943
    %1357 = vmatpush.bf16.msra.mxu0 %v939
    %1358 = vmatpush.bf16.msra.mxu0 %v935
    %1359 = vmatpush.bf16.msra.mxu0 %v931
    %1360 = vmatpush.bf16.msra.mxu0 %v927
    %1361 = vmatpush.bf16.msra.mxu0 %v923
    %1362 = vmatmul.bf16.gmra.mxu0 %v76
    %v1363 = vpop.f32.mrf.mxu0
    %v1364 = vadd.f32 %v1350, %v1363
    %v1365 = vpop.f32.mrf.mxu0
    %v1366 = vadd.f32 %v1352, %v1365
    %1367 = vdwg.mxu0
    %1368 = vmatpush.bf16.msra.mxu0 %v983
    %1369 = vmatpush.bf16.msra.mxu0 %v979
    %1370 = vmatpush.bf16.msra.mxu0 %v975
    %1371 = vmatpush.bf16.msra.mxu0 %v971
    %1372 = vmatpush.bf16.msra.mxu0 %v967
    %1373 = vmatpush.bf16.msra.mxu0 %v963
    %1374 = vmatpush.bf16.msra.mxu0 %v959
    %1375 = vmatpush.bf16.msra.mxu0 %v955
    %1376 = vmatmul.bf16.gmra.mxu0 %v77
    %v1377 = vpop.f32.mrf.mxu0
    %v1378 = vadd.f32 %v1364, %v1377
    %v1379 = vpop.f32.mrf.mxu0
    %v1380 = vadd.f32 %v1366, %v1379
    %1381 = vdwg.mxu0
    %1382 = vmatpush.bf16.msra.mxu0 %v1015
    %1383 = vmatpush.bf16.msra.mxu0 %v1011
    %1384 = vmatpush.bf16.msra.mxu0 %v1007
    %1385 = vmatpush.bf16.msra.mxu0 %v1003
    %1386 = vmatpush.bf16.msra.mxu0 %v999
    %1387 = vmatpush.bf16.msra.mxu0 %v995
    %1388 = vmatpush.bf16.msra.mxu0 %v991
    %1389 = vmatpush.bf16.msra.mxu0 %v987
    %1390 = vmatmul.bf16.gmra.mxu0 %v78
    %v1391 = vpop.f32.mrf.mxu0
    %v1392 = vadd.f32 %v1378, %v1391
    %v1393 = vpop.f32.mrf.mxu0
    %v1394 = vadd.f32 %v1380, %v1393
    %1395 = vdwg.mxu0
    %1396 = vmatpush.bf16.msra.mxu0 %v1047
    %1397 = vmatpush.bf16.msra.mxu0 %v1043
    %1398 = vmatpush.bf16.msra.mxu0 %v1039
    %1399 = vmatpush.bf16.msra.mxu0 %v1035
    %1400 = vmatpush.bf16.msra.mxu0 %v1031
    %1401 = vmatpush.bf16.msra.mxu0 %v1027
    %1402 = vmatpush.bf16.msra.mxu0 %v1023
    %1403 = vmatpush.bf16.msra.mxu0 %v1019
    %1404 = vmatmul.bf16.gmra.mxu0 %v79
    %v1405 = vpop.f32.mrf.mxu0
    %v1406 = vadd.f32 %v1392, %v1405
    %v1407 = vpop.f32.mrf.mxu0
    %v1408 = vadd.f32 %v1394, %v1407
    %1409 = vdwg.mxu0
    %1410 = vmatpush.bf16.msra.mxu0 %v888
    %1411 = vmatpush.bf16.msra.mxu0 %v884
    %1412 = vmatpush.bf16.msra.mxu0 %v880
    %1413 = vmatpush.bf16.msra.mxu0 %v876
    %1414 = vmatpush.bf16.msra.mxu0 %v872
    %1415 = vmatpush.bf16.msra.mxu0 %v868
    %1416 = vmatpush.bf16.msra.mxu0 %v864
    %1417 = vmatpush.bf16.msra.mxu0 %v860
    %1418 = vmatmul.bf16.gmra.mxu0 %v74
    %v1419 = vpop.f32.mrf.mxu0
    %v1420 = vadd.f32 %v276, %v1419
    %v1421 = vpop.f32.mrf.mxu0
    %v1422 = vadd.f32 %v276, %v1421
    %1423 = vdwg.mxu0
    %1424 = vmatpush.bf16.msra.mxu0 %v920
    %1425 = vmatpush.bf16.msra.mxu0 %v916
    %1426 = vmatpush.bf16.msra.mxu0 %v912
    %1427 = vmatpush.bf16.msra.mxu0 %v908
    %1428 = vmatpush.bf16.msra.mxu0 %v904
    %1429 = vmatpush.bf16.msra.mxu0 %v900
    %1430 = vmatpush.bf16.msra.mxu0 %v896
    %1431 = vmatpush.bf16.msra.mxu0 %v892
    %1432 = vmatmul.bf16.gmra.mxu0 %v75
    %v1433 = vpop.f32.mrf.mxu0
    %v1434 = vadd.f32 %v1420, %v1433
    %v1435 = vpop.f32.mrf.mxu0
    %v1436 = vadd.f32 %v1422, %v1435
    %1437 = vdwg.mxu0
    %1438 = vmatpush.bf16.msra.mxu0 %v952
    %1439 = vmatpush.bf16.msra.mxu0 %v948
    %1440 = vmatpush.bf16.msra.mxu0 %v944
    %1441 = vmatpush.bf16.msra.mxu0 %v940
    %1442 = vmatpush.bf16.msra.mxu0 %v936
    %1443 = vmatpush.bf16.msra.mxu0 %v932
    %1444 = vmatpush.bf16.msra.mxu0 %v928
    %1445 = vmatpush.bf16.msra.mxu0 %v924
    %1446 = vmatmul.bf16.gmra.mxu0 %v76
    %v1447 = vpop.f32.mrf.mxu0
    %v1448 = vadd.f32 %v1434, %v1447
    %v1449 = vpop.f32.mrf.mxu0
    %v1450 = vadd.f32 %v1436, %v1449
    %1451 = vdwg.mxu0
    %1452 = vmatpush.bf16.msra.mxu0 %v984
    %1453 = vmatpush.bf16.msra.mxu0 %v980
    %1454 = vmatpush.bf16.msra.mxu0 %v976
    %1455 = vmatpush.bf16.msra.mxu0 %v972
    %1456 = vmatpush.bf16.msra.mxu0 %v968
    %1457 = vmatpush.bf16.msra.mxu0 %v964
    %1458 = vmatpush.bf16.msra.mxu0 %v960
    %1459 = vmatpush.bf16.msra.mxu0 %v956
    %1460 = vmatmul.bf16.gmra.mxu0 %v77
    %v1461 = vpop.f32.mrf.mxu0
    %v1462 = vadd.f32 %v1448, %v1461
    %v1463 = vpop.f32.mrf.mxu0
    %v1464 = vadd.f32 %v1450, %v1463
    %1465 = vdwg.mxu0
    %1466 = vmatpush.bf16.msra.mxu0 %v1016
    %1467 = vmatpush.bf16.msra.mxu0 %v1012
    %1468 = vmatpush.bf16.msra.mxu0 %v1008
    %1469 = vmatpush.bf16.msra.mxu0 %v1004
    %1470 = vmatpush.bf16.msra.mxu0 %v1000
    %1471 = vmatpush.bf16.msra.mxu0 %v996
    %1472 = vmatpush.bf16.msra.mxu0 %v992
    %1473 = vmatpush.bf16.msra.mxu0 %v988
    %1474 = vmatmul.bf16.gmra.mxu0 %v78
    %v1475 = vpop.f32.mrf.mxu0
    %v1476 = vadd.f32 %v1462, %v1475
    %v1477 = vpop.f32.mrf.mxu0
    %v1478 = vadd.f32 %v1464, %v1477
    %1479 = vdwg.mxu0
    %1480 = vmatpush.bf16.msra.mxu0 %v1048
    %1481 = vmatpush.bf16.msra.mxu0 %v1044
    %1482 = vmatpush.bf16.msra.mxu0 %v1040
    %1483 = vmatpush.bf16.msra.mxu0 %v1036
    %1484 = vmatpush.bf16.msra.mxu0 %v1032
    %1485 = vmatpush.bf16.msra.mxu0 %v1028
    %1486 = vmatpush.bf16.msra.mxu0 %v1024
    %1487 = vmatpush.bf16.msra.mxu0 %v1020
    %1488 = vmatmul.bf16.gmra.mxu0 %v79
    %v1489 = vpop.f32.mrf.mxu0
    %v1490 = vadd.f32 %v1476, %v1489
    %v1491 = vpop.f32.mrf.mxu0
    %v1492 = vadd.f32 %v1478, %v1491
    %1493 = vdwg.mxu0
    %1494 = vmatpush.bf16.msra.mxu0 %v889
    %1495 = vmatpush.bf16.msra.mxu0 %v885
    %1496 = vmatpush.bf16.msra.mxu0 %v881
    %1497 = vmatpush.bf16.msra.mxu0 %v877
    %1498 = vmatpush.bf16.msra.mxu0 %v873
    %1499 = vmatpush.bf16.msra.mxu0 %v869
    %1500 = vmatpush.bf16.msra.mxu0 %v865
    %1501 = vmatpush.bf16.msra.mxu0 %v861
    %1502 = vmatmul.bf16.gmra.mxu0 %v74
    %v1503 = vpop.f32.mrf.mxu0
    %v1504 = vadd.f32 %v277, %v1503
    %v1505 = vpop.f32.mrf.mxu0
    %v1506 = vadd.f32 %v277, %v1505
    %1507 = vdwg.mxu0
    %1508 = vmatpush.bf16.msra.mxu0 %v921
    %1509 = vmatpush.bf16.msra.mxu0 %v917
    %1510 = vmatpush.bf16.msra.mxu0 %v913
    %1511 = vmatpush.bf16.msra.mxu0 %v909
    %1512 = vmatpush.bf16.msra.mxu0 %v905
    %1513 = vmatpush.bf16.msra.mxu0 %v901
    %1514 = vmatpush.bf16.msra.mxu0 %v897
    %1515 = vmatpush.bf16.msra.mxu0 %v893
    %1516 = vmatmul.bf16.gmra.mxu0 %v75
    %v1517 = vpop.f32.mrf.mxu0
    %v1518 = vadd.f32 %v1504, %v1517
    %v1519 = vpop.f32.mrf.mxu0
    %v1520 = vadd.f32 %v1506, %v1519
    %1521 = vdwg.mxu0
    %1522 = vmatpush.bf16.msra.mxu0 %v953
    %1523 = vmatpush.bf16.msra.mxu0 %v949
    %1524 = vmatpush.bf16.msra.mxu0 %v945
    %1525 = vmatpush.bf16.msra.mxu0 %v941
    %1526 = vmatpush.bf16.msra.mxu0 %v937
    %1527 = vmatpush.bf16.msra.mxu0 %v933
    %1528 = vmatpush.bf16.msra.mxu0 %v929
    %1529 = vmatpush.bf16.msra.mxu0 %v925
    %1530 = vmatmul.bf16.gmra.mxu0 %v76
    %v1531 = vpop.f32.mrf.mxu0
    %v1532 = vadd.f32 %v1518, %v1531
    %v1533 = vpop.f32.mrf.mxu0
    %v1534 = vadd.f32 %v1520, %v1533
    %1535 = vdwg.mxu0
    %1536 = vmatpush.bf16.msra.mxu0 %v985
    %1537 = vmatpush.bf16.msra.mxu0 %v981
    %1538 = vmatpush.bf16.msra.mxu0 %v977
    %1539 = vmatpush.bf16.msra.mxu0 %v973
    %1540 = vmatpush.bf16.msra.mxu0 %v969
    %1541 = vmatpush.bf16.msra.mxu0 %v965
    %1542 = vmatpush.bf16.msra.mxu0 %v961
    %1543 = vmatpush.bf16.msra.mxu0 %v957
    %1544 = vmatmul.bf16.gmra.mxu0 %v77
    %v1545 = vpop.f32.mrf.mxu0
    %v1546 = vadd.f32 %v1532, %v1545
    %v1547 = vpop.f32.mrf.mxu0
    %v1548 = vadd.f32 %v1534, %v1547
    %1549 = vdwg.mxu0
    %1550 = vmatpush.bf16.msra.mxu0 %v1017
    %1551 = vmatpush.bf16.msra.mxu0 %v1013
    %1552 = vmatpush.bf16.msra.mxu0 %v1009
    %1553 = vmatpush.bf16.msra.mxu0 %v1005
    %1554 = vmatpush.bf16.msra.mxu0 %v1001
    %1555 = vmatpush.bf16.msra.mxu0 %v997
    %1556 = vmatpush.bf16.msra.mxu0 %v993
    %1557 = vmatpush.bf16.msra.mxu0 %v989
    %1558 = vmatmul.bf16.gmra.mxu0 %v78
    %v1559 = vpop.f32.mrf.mxu0
    %v1560 = vadd.f32 %v1546, %v1559
    %v1561 = vpop.f32.mrf.mxu0
    %v1562 = vadd.f32 %v1548, %v1561
    %1563 = vdwg.mxu0
    %1564 = vmatpush.bf16.msra.mxu0 %v1049
    %1565 = vmatpush.bf16.msra.mxu0 %v1045
    %1566 = vmatpush.bf16.msra.mxu0 %v1041
    %1567 = vmatpush.bf16.msra.mxu0 %v1037
    %1568 = vmatpush.bf16.msra.mxu0 %v1033
    %1569 = vmatpush.bf16.msra.mxu0 %v1029
    %1570 = vmatpush.bf16.msra.mxu0 %v1025
    %1571 = vmatpush.bf16.msra.mxu0 %v1021
    %1572 = vmatmul.bf16.gmra.mxu0 %v79
    %v1573 = vpop.f32.mrf.mxu0
    %v1574 = vadd.f32 %v1560, %v1573
    %v1575 = vpop.f32.mrf.mxu0
    %v1576 = vadd.f32 %v1562, %v1575
    %1577 = vdwg.mxu0
    %v1578 = vmax.f32 %v1322, 0.0
    %v1579 = vmax.f32 %v1406, 0.0
    %v1580 = vmax.f32 %v1490, 0.0
    %v1581 = vmax.f32 %v1574, 0.0
    %v1582 = vmax.f32 %v1324, 0.0
    %v1583 = vmax.f32 %v1408, 0.0
    %v1584 = vmax.f32 %v1492, 0.0
    %v1585 = vmax.f32 %v1576, 0.0
    %v1586 = vld [vmem:[#allocation6] sm:$0xf]
    %v1588 = vperm.slane %v1586, 0
    %v1589 = vperm.slane %v1586, 1
    %v1590 = vperm.slane %v1586, 2
    %v1591 = vperm.slane %v1586, 3
    %v1596 = vmul.f32 %v1578, %v1588
    %v1597 = vmul.f32 %v1579, %v1589
    %v1598 = vmul.f32 %v1580, %v1590
    %v1599 = vmul.f32 %v1581, %v1591
    %v1600 = vmul.f32 %v1582, %v1588
    %v1601 = vmul.f32 %v1583, %v1589
    %v1602 = vmul.f32 %v1584, %v1590
    %v1603 = vmul.f32 %v1585, %v1591
    %v1604 = vadd.f32 %v1596, %v1597
    %v1605 = vadd.f32 %v1604, %v1598
    %v1606 = vadd.f32 %v1605, %v1599
    %1607 = vadd.xlane.f32.xlu0 %v1606
    %v1608 = vpop.xlane.xlu0 %1607
    %v1609 = vadd.f32 %v1600, %v1601
    %v1610 = vadd.f32 %v1609, %v1602
    %v1611 = vadd.f32 %v1610, %v1603
    %1612 = vadd.xlane.f32.xlu0 %v1611
    %v1613 = vpop.xlane.xlu0 %1612
    %v1616 = vlaneseq
    %v1617 = vand.u32 %v1616, 127
    %v1618 = vperm.slane %v1608, %v1617
    %v1619 = vadd.s32 %v1617, 4294967288
    %v1620 = vperm.slane %v1613, %v1619
    %vm1621 = vcmask 130112
    %v1622 = vsel %vm1621, %v1620, %v1618
    %vm1624 = vcmask 122880
    %1625 = vst.msk [vmem:[%s4] sm:$0x1] %vm1624, %v1622
    // Predicated region
    $region30: #{critic_forward.1} parent=1 // pred_check
      _
    $region31: #{critic_forward.1} parent=1 // pred_check_branch
      %1627 = sbr.rel (0) target = $region33
    $region32: #{critic_forward.1} parent=1 // pred_region
      _
    $region33: #{critic_forward.1} parent=1 // pred_fallthru
      _
    // Predicated region
    $region34: #{critic_forward.1} parent=1 // pred_check
      _
    $region35: #{critic_forward.1} parent=1 // pred_check_branch
      %1629 = sbr.rel (0) target = $region37
    $region36: #{critic_forward.1} parent=1 // pred_region
      _
    $region37: #{critic_forward.1} parent=1 // pred_fallthru
      _
    %1630 = vsyncpa [#allocation3], 1
    %1631 = vsyncpa [#allocation5], 1

</llo_original>
